<compile_context>
chip_gen: v7x
topology: tpu7x:2x2x1
jax: 0.10.0
libtpu: 0.0.40
codegen_flags: <defaults>
</compile_context>

<pallas_src>
import functools

import jax
import jax.numpy as jnp
from jax import lax
from jax.experimental import pallas as pl
from jax.experimental.pallas import tpu as pltpu


# --------------------------------------------------------------------------
# Generation-aware VMEM budget
# --------------------------------------------------------------------------
def _vmem_limit_bytes():
    """Scoped-VMEM limit: 96 MiB on 128-MiB parts (v5e/v6e), <=48 MiB on v7x."""
    try:
        phys = int(pltpu.get_tpu_info().vmem_capacity_bytes)
    except Exception:
        phys = None
    if phys is None:
        return 48 * 1024 * 1024                     # conservative, safe on v7x
    if phys >= 128 * 1024 * 1024:
        return 96 * 1024 * 1024                     # v5e / v6e
    return min(48 * 1024 * 1024, int(0.75 * phys))  # v7x (64 MiB/TC) or smaller


# --------------------------------------------------------------------------
# Fused whole-network kernel (single grid step, adj resident across layers)
# --------------------------------------------------------------------------
def _gcn_fused_kernel(*refs, num_layers, normalize):
    # refs = (adj_ref, x_ref, w_ref_0, ..., w_ref_{L-1}, o_ref)
    adj_ref = refs[0]
    x_ref = refs[1]
    w_refs = refs[2:2 + num_layers]
    o_ref = refs[2 + num_layers]

    adj = adj_ref[...]            # (N, N) bf16 -- loaded once, reused by all layers
    h = x_ref[...]                # (N, Fin0) bf16

    for li in range(num_layers):
        fin, fout = w_refs[li].shape
        w = w_refs[li][...]       # bf16
        last = li == num_layers - 1

        if fin <= fout:
            # aggregate first: inner width of the big N x N matmul = Fin
            agg = jnp.dot(adj, h, preferred_element_type=jnp.float32)
            out = jnp.dot(agg.astype(jnp.bfloat16), w,
                          preferred_element_type=jnp.float32)
        else:
            # transform first: inner width of the big N x N matmul = Fout
            sup = jnp.dot(h, w, preferred_element_type=jnp.float32)
            out = jnp.dot(adj, sup.astype(jnp.bfloat16),
                          preferred_element_type=jnp.float32)

        if normalize and not last:
            # F.normalize(h, p=2, dim=-1), eps=1e-12:
            # h / max(||h||, 1e-12) == h * rsqrt(max(||h||^2, 1e-24))
            sq = jnp.sum(out * out, axis=-1, keepdims=True)
            out = out * lax.rsqrt(jnp.maximum(sq, 1e-24))
        if not last:
            out = jnp.maximum(out, 0.0)
            h = out.astype(jnp.bfloat16)
        else:
            h = out

    o_ref[...] = h.astype(o_ref.dtype)


def _fused_fits(n, feats_bf16, weights_bf16, vmem_limit):
    """Rough VMEM working-set estimate for the fused single-step kernel."""
    max_f = max(max(w.shape) for w in weights_bf16)
    fout_last = weights_bf16[-1].shape[1]
    need = (2 * n * n * 2                              # adj bf16 (double-buffered)
            + 2 * feats_bf16.size * 2                  # features bf16
            + 2 * sum(w.size * 2 for w in weights_bf16)
            + 2 * n * fout_last * 4                    # f32 output
            + 3 * n * max_f * 4)                       # in-kernel live activations
    return need <= int(0.75 * vmem_limit)


def _gcn_forward_fused(adj_bf16, feats_bf16, weights_bf16, *, normalize, vmem_limit):
    N = adj_bf16.shape[0]
    num_layers = len(weights_bf16)
    fout_last = weights_bf16[-1].shape[1]

    flops = 0
    for w in weights_bf16:
        fin, fout = w.shape
        flops += 2 * N * N * min(fin, fout) + 2 * N * fin * fout
    transcendentals = N * (num_layers - 1) if normalize else 0
    bytes_accessed = (adj_bf16.size * 2 + feats_bf16.size * 2
                      + sum(w.size * 2 for w in weights_bf16) + N * fout_last * 4)

    kernel = functools.partial(
        _gcn_fused_kernel, num_layers=num_layers, normalize=normalize)

    in_specs = [
        pl.BlockSpec((N, N), lambda i: (0, 0)),              # adj (bf16)
        pl.BlockSpec(feats_bf16.shape, lambda i: (0, 0)),    # features (bf16)
    ]
    for w in weights_bf16:
        in_specs.append(pl.BlockSpec(w.shape, lambda i: (0, 0)))

    return pl.pallas_call(
        kernel,
        out_shape=jax.ShapeDtypeStruct((N, fout_last), jnp.float32),
        grid=(1,),
        in_specs=in_specs,
        out_specs=pl.BlockSpec((N, fout_last), lambda i: (0, 0)),
        compiler_params=pltpu.CompilerParams(
            dimension_semantics=("arbitrary",),
            vmem_limit_bytes=vmem_limit),
        cost_estimate=pl.CostEstimate(
            flops=int(flops),
            transcendentals=int(transcendentals),
            bytes_accessed=int(bytes_accessed)),
    )(adj_bf16, feats_bf16, *weights_bf16)


# --------------------------------------------------------------------------
# Row + K tiled per-layer path for N too large to keep adj resident
# --------------------------------------------------------------------------
_TILE_CANDS = (4096, 3072, 2048, 1536, 1024, 768, 512, 384, 256, 128)


def _pick_tiles(n, feat_dim, fout, w_bytes, vmem_limit):
    """Largest (tile_n, tile_k) that fits ~70% of the VMEM budget.

    Prefers >=2 row steps (megacore), the largest K tile (fewest accumulator
    passes), and 256-aligned row tiles (full MXU fill on v6e/v7x).
    """
    budget = int(0.7 * vmem_limit)

    def vmem_use(tn, tk):
        return (2 * tn * tk * 2            # adj tile (bf16), double-buffered
                + 2 * tk * feat_dim * 2    # feature tile (bf16), double-buffered
                + 2 * tn * fout * 4        # output tile, double-buffered
                + tn * feat_dim * 4        # f32 accumulator scratch
                + 2 * w_bytes)             # resident weight (if any)

    def cands(m):
        c = [t for t in _TILE_CANDS if m % t == 0 and t < m]
        c.append(m)
        return sorted(set(c), reverse=True)

    best = None
    for tn in cands(n):
        for tk in cands(n):
            if vmem_use(tn, tk) > budget:
                continue
            score = (min(n // tn, 2),              # >=2 row steps -> both cores
                     tk,                           # big K tile
                     1 if tn % 256 == 0 else 0,    # 256-aligned rows
                     tn)                           # then biggest row tile
            if best is None or score > best[1]:
                best = ((tn, tk), score)
    if best is None:
        # TODO(synk): pathological feat_dim; fall back to the smallest legal
        # tiles and rely on the raised vmem limit.
        return cands(n)[-1], cands(n)[-1]
    return best[0]


def _gcn_layer_tiled_kernel(*refs, apply_w, apply_relu, apply_norm):
    if apply_w:
        adj_ref, f_ref, w_ref, o_ref, acc_ref = refs
    else:
        adj_ref, f_ref, o_ref, acc_ref = refs
        w_ref = None

    k = pl.program_id(1)

    @pl.when(k == 0)
    def _():
        acc_ref[...] = jnp.zeros_like(acc_ref)

    acc_ref[...] += jnp.dot(adj_ref[...], f_ref[...],
                            preferred_element_type=jnp.float32)

    @pl.when(k == pl.num_programs(1) - 1)
    def _():
        out = acc_ref[...]
        if apply_w:
            out = jnp.dot(out.astype(jnp.bfloat16), w_ref[...],
                          preferred_element_type=jnp.float32)
        if apply_norm:
            sq = jnp.sum(out * out, axis=-1, keepdims=True)
            out = out * lax.rsqrt(jnp.maximum(sq, 1e-24))
        if apply_relu:
            out = jnp.maximum(out, 0.0)
        o_ref[...] = out.astype(o_ref.dtype)


def _gcn_layer_tiled(adj_bf16, h_bf16, w_bf16, *, last, normalize, vmem_limit):
    N = adj_bf16.shape[0]
    fin, fout = w_bf16.shape
    apply_relu = not last
    apply_norm = normalize and not last
    out_dtype = jnp.float32 if last else jnp.bfloat16   # bf16 between layers

    if fout <= fin:
        # Hoist the feature transform out of the row/K grid: support = h @ W is
        # computed once per layer; the bf16 convert fuses into the dot epilogue.
        feat = jnp.dot(h_bf16, w_bf16,
                       preferred_element_type=jnp.float32).astype(jnp.bfloat16)
        apply_w = False
        feat_dim = fout
        w_bytes = 0
    else:
        # Aggregate first (inner width = fin), transform inside the epilogue.
        feat = h_bf16
        apply_w = True
        feat_dim = fin
        w_bytes = fin * fout * 2

    tile_n, tile_k = _pick_tiles(N, feat_dim, fout, w_bytes, vmem_limit)
    grid = (N // tile_n, N // tile_k)

    kernel = functools.partial(
        _gcn_layer_tiled_kernel,
        apply_w=apply_w, apply_relu=apply_relu, apply_norm=apply_norm)

    in_specs = [
        pl.BlockSpec((tile_n, tile_k), lambda i, k: (i, k)),    # adj tile
        pl.BlockSpec((tile_k, feat_dim), lambda i, k: (k, 0)),  # feature/support
    ]
    operands = [adj_bf16, feat]
    if apply_w:
        in_specs.append(pl.BlockSpec((fin, fout), lambda i, k: (0, 0)))
        operands.append(w_bf16)

    flops = 2 * N * N * feat_dim + (2 * N * fin * fout if apply_w else 0)
    bytes_accessed = (adj_bf16.size * 2
                      + (N // tile_n) * N * feat_dim * 2
                      + w_bytes + N * fout * (4 if last else 2))

    return pl.pallas_call(
        kernel,
        out_shape=jax.ShapeDtypeStruct((N, fout), out_dtype),
        grid=grid,
        in_specs=in_specs,
        out_specs=pl.BlockSpec((tile_n, fout), lambda i, k: (i, 0)),
        scratch_shapes=[pltpu.VMEM((tile_n, feat_dim), jnp.float32)],
        compiler_params=pltpu.CompilerParams(
            dimension_semantics=("parallel", "arbitrary"),
            vmem_limit_bytes=vmem_limit),
        cost_estimate=pl.CostEstimate(
            flops=int(flops),
            transcendentals=int(N if apply_norm else 0),
            bytes_accessed=int(bytes_accessed)),
    )(*operands)


# --------------------------------------------------------------------------
# Forward (mirror of GCN.forward)
# --------------------------------------------------------------------------
def gcn_forward(adj, feats, weights, *, normalize=True, force_tiled=False):
    # Cast the big operands once, outside the kernels (adj / feats / W -> bf16;
    # all matmuls accumulate in f32 on the MXU).
    adj_bf16 = adj.astype(jnp.bfloat16)
    feats_bf16 = feats.astype(jnp.bfloat16)
    weights_bf16 = [w.astype(jnp.bfloat16) for w in weights]
    vmem_limit = _vmem_limit_bytes()

    if not force_tiled and _fused_fits(adj.shape[0], feats_bf16, weights_bf16,
                                       vmem_limit):
        # TODO(synk): on v7x the grid=(1,) fused path uses one of the two
        # TensorCores; a 2-way row split of the last layer would use both.
        return _gcn_forward_fused(adj_bf16, feats_bf16, weights_bf16,
                                  normalize=normalize, vmem_limit=vmem_limit)

    num_layers = len(weights_bf16)
    h = feats_bf16
    for idx, w in enumerate(weights_bf16):
        last = idx == num_layers - 1
        h = _gcn_layer_tiled(adj_bf16, h, w, last=last, normalize=normalize,
                             vmem_limit=vmem_limit)
    return h


# --------------------------------------------------------------------------
# Pure-JAX reference (f32) and input builders
# --------------------------------------------------------------------------
def gcn_reference(adj, feats, weights, *, normalize=True):
    h = feats
    num_layers = len(weights)
    for idx, w in enumerate(weights):
        last = idx == num_layers - 1
        h = adj @ (h @ w)
        if normalize and not last:
            n = jnp.sqrt(jnp.sum(h * h, axis=-1, keepdims=True))
            h = h / jnp.maximum(n, 1e-12)
        if not last:
            h = jnp.maximum(h, 0.0)
    return h


def _xavier(key, fan_in, fan_out):
    bound = (6.0 / (fan_in + fan_out)) ** 0.5
    return jax.random.uniform(
        key, (fan_in, fan_out), minval=-bound, maxval=bound, dtype=jnp.float32)


def _make_normalized_adj(key, n):
    """Dense symmetric-normalized adjacency D^{-1/2}(A+I)D^{-1/2} (plain JAX glue)."""
    logits = jax.random.uniform(key, (n, n))
    a = (logits < 0.05).astype(jnp.float32)
    a = jnp.maximum(a, a.T)
    a = a + jnp.eye(n, dtype=jnp.float32)
    deg = jnp.sum(a, axis=-1)
    d_inv_sqrt = 1.0 / jnp.sqrt(jnp.maximum(deg, 1.0))
    return a * d_inv_sqrt[:, None] * d_inv_sqrt[None, :]


if __name__ == "__main__":
    key = jax.random.PRNGKey(0)
    k_adj, k_feat, k_w0, k_w1 = jax.random.split(key, 4)

    # Small, tile-friendly problem: 128 nodes, 2 GraphConv layers.
    N = 128
    fan_in = [32, 64]
    fan_out = [64, 16]

    adj = _make_normalized_adj(k_adj, N)                                  # [N, N]
    feats = jax.random.normal(k_feat, (N, fan_in[0]), dtype=jnp.float32)  # [N, Fin0]
    weights = [
        _xavier(k_w0, fan_in[0], fan_out[0]),   # layer 0: 32 -> 64 (norm + relu)
        _xavier(k_w1, fan_in[1], fan_out[1]),   # layer 1 (last): 64 -> 16
    ]

    # Fused single-call path (primary whenever the working set fits VMEM).
    out_fused = jax.block_until_ready(
        gcn_forward(adj, feats, weights, normalize=True))
    # Row/K-tiled path (large-N fallback), exercised here too.
    out_tiled = jax.block_until_ready(
        gcn_forward(adj, feats, weights, normalize=True, force_tiled=True))

    ref = gcn_reference(adj, feats, weights, normalize=True)

    assert out_fused.shape == (N, fan_out[-1]) and out_fused.dtype == jnp.float32
    assert out_tiled.shape == (N, fan_out[-1]) and out_tiled.dtype == jnp.float32
    # bf16 operands with f32 MXU accumulation -> generous tolerance vs f32 ref.
    assert jnp.allclose(out_fused, ref, rtol=5e-2, atol=5e-2)
    assert jnp.allclose(out_tiled, ref, rtol=5e-2, atol=5e-2)
    print("KERNEL_OK")
</pallas_src>

<mosaic_0001>
module attributes {stable_mosaic.version = 11 : i64} {
  func.func @_gcn_fused_kernel(%arg0: i32, %arg1: memref<128x128xbf16, #tpu.memory_space<vmem>>, %arg2: memref<128x32xbf16, #tpu.memory_space<vmem>>, %arg3: memref<32x64xbf16, #tpu.memory_space<vmem>>, %arg4: memref<64x16xbf16, #tpu.memory_space<vmem>>, %arg5: memref<128x16xf32, #tpu.memory_space<vmem>>) attributes {dimension_semantics = [#tpu.dimension_semantics<arbitrary>], iteration_bounds = array<i64: 1>, scalar_prefetch = 0 : i64, scratch_operands = 0 : i64, tpu.core_type = #tpu.core_type<tc>, window_params = [{pipeline_mode = #tpu.pipeline_mode<synchronous>, transform_indices = @transform_0, window_bounds = array<i64: 128, 128>}, {pipeline_mode = #tpu.pipeline_mode<synchronous>, transform_indices = @transform_1, window_bounds = array<i64: 128, 32>}, {pipeline_mode = #tpu.pipeline_mode<synchronous>, transform_indices = @transform_2, window_bounds = array<i64: 32, 64>}, {pipeline_mode = #tpu.pipeline_mode<synchronous>, transform_indices = @transform_3, window_bounds = array<i64: 64, 16>}, {pipeline_mode = #tpu.pipeline_mode<synchronous>, transform_indices = @transform_4, window_bounds = array<i64: 128, 16>}]} {
    %c0 = arith.constant 0 : index
    %c0_0 = arith.constant 0 : index
    %0 = vector.load %arg1[%c0, %c0_0] : memref<128x128xbf16, #tpu.memory_space<vmem>>, vector<128x128xbf16>
    %c0_1 = arith.constant 0 : index
    %c0_2 = arith.constant 0 : index
    %1 = vector.load %arg2[%c0_1, %c0_2] : memref<128x32xbf16, #tpu.memory_space<vmem>>, vector<128x32xbf16>
    %c0_3 = arith.constant 0 : index
    %c0_4 = arith.constant 0 : index
    %2 = vector.load %arg3[%c0_3, %c0_4] : memref<32x64xbf16, #tpu.memory_space<vmem>>, vector<32x64xbf16>
    %cst = arith.constant dense<0.000000e+00> : vector<128x32xf32>
    %3 = tpu.matmul %0, %1, %cst {dimension_numbers = #tpu.dot_dimension_numbers<[1], [0], [0], [1], [0, 0, 1, 1], [], []>} : vector<128x128xbf16>, vector<128x32xbf16>, vector<128x32xf32> -> vector<128x32xf32>
    %4 = arith.truncf %3 : vector<128x32xf32> to vector<128x32xbf16>
    %cst_5 = arith.constant dense<0.000000e+00> : vector<128x64xf32>
    %5 = tpu.matmul %4, %2, %cst_5 {dimension_numbers = #tpu.dot_dimension_numbers<[1], [0], [0], [1], [0, 0, 1, 1], [], []>} : vector<128x32xbf16>, vector<32x64xbf16>, vector<128x64xf32> -> vector<128x64xf32>
    %6 = arith.mulf %5, %5 : vector<128x64xf32>
    %cst_6 = arith.constant dense<0.000000e+00> : vector<128xf32>
    %7 = vector.multi_reduction <add>, %6, %cst_6 [1] : vector<128x64xf32> to vector<128xf32>
    %8 = vector.shape_cast %7 : vector<128xf32> to vector<128x1xf32>
    %cst_7 = arith.constant 1.000000e-24 : f32
    %9 = vector.broadcast %cst_7 : f32 to vector<128x1xf32>
    %10 = arith.maximumf %8, %9 : vector<128x1xf32>
    %11 = math.rsqrt %10 : vector<128x1xf32>
    %12 = vector.broadcast %11 : vector<128x1xf32> to vector<128x64xf32>
    %13 = arith.mulf %5, %12 : vector<128x64xf32>
    %cst_8 = arith.constant 0.000000e+00 : f32
    %14 = vector.broadcast %cst_8 : f32 to vector<128x64xf32>
    %15 = arith.maximumf %13, %14 : vector<128x64xf32>
    %16 = arith.truncf %15 : vector<128x64xf32> to vector<128x64xbf16>
    %c0_9 = arith.constant 0 : index
    %c0_10 = arith.constant 0 : index
    %17 = vector.load %arg4[%c0_9, %c0_10] : memref<64x16xbf16, #tpu.memory_space<vmem>>, vector<64x16xbf16>
    %cst_11 = arith.constant dense<0.000000e+00> : vector<128x16xf32>
    %18 = tpu.matmul %16, %17, %cst_11 {dimension_numbers = #tpu.dot_dimension_numbers<[1], [0], [0], [1], [0, 0, 1, 1], [], []>} : vector<128x64xbf16>, vector<64x16xbf16>, vector<128x16xf32> -> vector<128x16xf32>
    %19 = arith.truncf %18 : vector<128x16xf32> to vector<128x16xbf16>
    %cst_12 = arith.constant dense<0.000000e+00> : vector<128x16xf32>
    %20 = tpu.matmul %0, %19, %cst_12 {dimension_numbers = #tpu.dot_dimension_numbers<[1], [0], [0], [1], [0, 0, 1, 1], [], []>} : vector<128x128xbf16>, vector<128x16xbf16>, vector<128x16xf32> -> vector<128x16xf32>
    %c0_13 = arith.constant 0 : index
    %c0_14 = arith.constant 0 : index
    %21 = vector.load %arg5[%c0_13, %c0_14] : memref<128x16xf32, #tpu.memory_space<vmem>>, vector<128x16xf32>
    tpu.vector_store %arg5[%c0_13, %c0_14], %20 {strides = array<i32>} : memref<128x16xf32, #tpu.memory_space<vmem>>, vector<128x16xf32>,
    return
  }
  func.func @transform_0(%arg0: i32) -> (i32, i32) {
    %c0_i32 = arith.constant 0 : i32
    %c0_i32_0 = arith.constant 0 : i32
    %c0_i32_1 = arith.constant 0 : i32
    return %c0_i32, %c0_i32_0 : i32, i32
  }
  func.func @transform_1(%arg0: i32) -> (i32, i32) {
    %c0_i32 = arith.constant 0 : i32
    %c0_i32_0 = arith.constant 0 : i32
    %c0_i32_1 = arith.constant 0 : i32
    return %c0_i32, %c0_i32_0 : i32, i32
  }
  func.func @transform_2(%arg0: i32) -> (i32, i32) {
    %c0_i32 = arith.constant 0 : i32
    %c0_i32_0 = arith.constant 0 : i32
    %c0_i32_1 = arith.constant 0 : i32
    return %c0_i32, %c0_i32_0 : i32, i32
  }
  func.func @transform_3(%arg0: i32) -> (i32, i32) {
    %c0_i32 = arith.constant 0 : i32
    %c0_i32_0 = arith.constant 0 : i32
    %c0_i32_1 = arith.constant 0 : i32
    return %c0_i32, %c0_i32_0 : i32, i32
  }
  func.func @transform_4(%arg0: i32) -> (i32, i32) {
    %c0_i32 = arith.constant 0 : i32
    %c0_i32_0 = arith.constant 0 : i32
    %c0_i32_1 = arith.constant 0 : i32
    return %c0_i32, %c0_i32_0 : i32, i32
  }
}

</mosaic_0001>

<llo_original>
// kernel: tpu_custom_call.1
$region0: #{tpu_custom_call.1}
  #allocation0 [shape = 'u32[]', space=smem, size = 0x4, offset = 0x4, fixed_abs, tag = 'smem constant byte address 0x4 - core index']
  #allocation1 [shape = 'u32[144,128]{1,0:T(1,128)}', space=vmem, size = 0x12000, scoped, tag = 'internal scratch']
  %s0 = inlined_call_operand.vmem [shape: bf16[128,128], index: 0, kind: input, shape index: {}]
  %s1 = inlined_call_operand.vmem [shape: bf16[128,32], index: 1, kind: input, shape index: {}]
  %s2 = inlined_call_operand.vmem [shape: bf16[32,64], index: 2, kind: input, shape index: {}]
  %s3 = inlined_call_operand.vmem [shape: bf16[64,16], index: 3, kind: input, shape index: {}]
  %s4 = inlined_call_operand.vmem [shape: f32[128,16], index: 4, kind: output, shape index: {}]
  %s5 = sld [smem:[#allocation0]]
  $region26: #{tpu_custom_call.1} parent=0
    _
  %s7 = ssub.s32 1, %s5
  %s8 = scalar_select 0, %s7, %s5
  // Predicated region
  $region2: #{tpu_custom_call.1} parent=0 // pred_check
    _
  $region3: #{tpu_custom_call.1} parent=0 // pred_check_branch
    %10 = sbr.rel (0) target = $region5
  $region4: #{tpu_custom_call.1} parent=0 // pred_region
    _
  $region5: #{tpu_custom_call.1} parent=0 // pred_fallthru
    _
  // Predicated region
  $region6: #{tpu_custom_call.1} parent=0 // pred_check
    _
  $region7: #{tpu_custom_call.1} parent=0 // pred_check_branch
    %12 = sbr.rel (0) target = $region9
  $region8: #{tpu_custom_call.1} parent=0 // pred_region
    _
  $region9: #{tpu_custom_call.1} parent=0 // pred_fallthru
    _
  // Predicated region
  $region10: #{tpu_custom_call.1} parent=0 // pred_check
    _
  $region11: #{tpu_custom_call.1} parent=0 // pred_check_branch
    %14 = sbr.rel (0) target = $region13
  $region12: #{tpu_custom_call.1} parent=0 // pred_region
    _
  $region13: #{tpu_custom_call.1} parent=0 // pred_fallthru
    _
  // Predicated region
  $region14: #{tpu_custom_call.1} parent=0 // pred_check
    _
  $region15: #{tpu_custom_call.1} parent=0 // pred_check_branch
    %16 = sbr.rel (0) target = $region17
  $region16: #{tpu_custom_call.1} parent=0 // pred_region
    _
  $region17: #{tpu_custom_call.1} parent=0 // pred_fallthru
    _
  %v18 = vld [vmem:[%s0] sm:$0xf]
  %v19 = vld [vmem:[%s0 + $0x4] sm:$0xf]
  %v20 = vld [vmem:[%s0 + $0x8] sm:$0xf]
  %v21 = vld [vmem:[%s0 + $0xc] sm:$0xf]
  %v22 = vld [vmem:[%s0 + $0x10] sm:$0xf]
  %v23 = vld [vmem:[%s0 + $0x14] sm:$0xf]
  %v24 = vld [vmem:[%s0 + $0x18] sm:$0xf]
  %v25 = vld [vmem:[%s0 + $0x1c] sm:$0xf]
  %v26 = vld [vmem:[%s0 + $0x20] sm:$0xf]
  %v27 = vld [vmem:[%s0 + $0x24] sm:$0xf]
  %v28 = vld [vmem:[%s0 + $0x28] sm:$0xf]
  %v29 = vld [vmem:[%s0 + $0x2c] sm:$0xf]
  %v30 = vld [vmem:[%s0 + $0x30] sm:$0xf]
  %v31 = vld [vmem:[%s0 + $0x34] sm:$0xf]
  %v32 = vld [vmem:[%s0 + $0x38] sm:$0xf]
  %v33 = vld [vmem:[%s0 + $0x3c] sm:$0xf]
  %v34 = vld [vmem:[%s1] sm:$0xf]
  %v35 = vld [vmem:[%s1 + $0x4] sm:$0xf]
  %v36 = vld [vmem:[%s1 + $0x8] sm:$0xf]
  %v37 = vld [vmem:[%s1 + $0xc] sm:$0xf]
  %v38 = vld [vmem:[%s1 + $0x10] sm:$0xf]
  %v39 = vld [vmem:[%s1 + $0x14] sm:$0xf]
  %v40 = vld [vmem:[%s1 + $0x18] sm:$0xf]
  %v41 = vld [vmem:[%s1 + $0x1c] sm:$0xf]
  %v42 = vld [vmem:[%s1 + $0x20] sm:$0xf]
  %v43 = vld [vmem:[%s1 + $0x24] sm:$0xf]
  %v44 = vld [vmem:[%s1 + $0x28] sm:$0xf]
  %v45 = vld [vmem:[%s1 + $0x2c] sm:$0xf]
  %v46 = vld [vmem:[%s1 + $0x30] sm:$0xf]
  %v47 = vld [vmem:[%s1 + $0x34] sm:$0xf]
  %v48 = vld [vmem:[%s1 + $0x38] sm:$0xf]
  %v49 = vld [vmem:[%s1 + $0x3c] sm:$0xf]
  %v50 = vld [vmem:[%s2] sm:$0xf]
  %v51 = vld [vmem:[%s2 + $0x4] sm:$0xf]
  %v52 = vld [vmem:[%s2 + $0x8] sm:$0xf]
  %v53 = vld [vmem:[%s2 + $0xc] sm:$0xf]
  %v70 = vunpack.c.l.b16 %v18
  %v71 = vunpack.c.l.b16 %v19
  %v72 = vunpack.c.l.b16 %v20
  %v73 = vunpack.c.l.b16 %v21
  %v74 = vunpack.c.l.b16 %v22
  %v75 = vunpack.c.l.b16 %v23
  %v76 = vunpack.c.l.b16 %v24
  %v77 = vunpack.c.l.b16 %v25
  %v78 = vunpack.c.l.b16 %v26
  %v79 = vunpack.c.l.b16 %v27
  %v80 = vunpack.c.l.b16 %v28
  %v81 = vunpack.c.l.b16 %v29
  %v82 = vunpack.c.l.b16 %v30
  %v83 = vunpack.c.l.b16 %v31
  %v84 = vunpack.c.l.b16 %v32
  %v85 = vunpack.c.l.b16 %v33
  %v86 = vpack.c.b16 %v71, %v70
  %v87 = vpack.c.b16 %v73, %v72
  %v88 = vpack.c.b16 %v75, %v74
  %v89 = vpack.c.b16 %v77, %v76
  %v90 = vpack.c.b16 %v79, %v78
  %v91 = vpack.c.b16 %v81, %v80
  %v92 = vpack.c.b16 %v83, %v82
  %v93 = vpack.c.b16 %v85, %v84
  %v118 = vunpack.c.l.b16 %v34
  %v119 = vunpack.c.l.b16 %v35
  %v120 = vunpack.c.l.b16 %v36
  %v121 = vunpack.c.l.b16 %v37
  %v122 = vunpack.c.l.b16 %v38
  %v123 = vunpack.c.l.b16 %v39
  %v124 = vunpack.c.l.b16 %v40
  %v125 = vunpack.c.l.b16 %v41
  %v126 = vunpack.c.l.b16 %v42
  %v127 = vunpack.c.l.b16 %v43
  %v128 = vunpack.c.l.b16 %v44
  %v129 = vunpack.c.l.b16 %v45
  %v130 = vunpack.c.l.b16 %v46
  %v131 = vunpack.c.l.b16 %v47
  %v132 = vunpack.c.l.b16 %v48
  %v133 = vunpack.c.l.b16 %v49
  %v134 = vpack.c.b16 %v119, %v118
  %v135 = vpack.c.b16 %v121, %v120
  %v136 = vpack.c.b16 %v123, %v122
  %v137 = vpack.c.b16 %v125, %v124
  %v138 = vpack.c.b16 %v127, %v126
  %v139 = vpack.c.b16 %v129, %v128
  %v140 = vpack.c.b16 %v131, %v130
  %v141 = vpack.c.b16 %v133, %v132
  %150 = vmatprep.subr.bf16.mxu0 0
  %151 = vmatpush1.bf16.msra.mxu0 %v134
  %152 = vmatprep.subr.bf16.mxu0 0
  %153 = vmatpush1.bf16.msra.mxu0 %v135
  %154 = vmatprep.subr.bf16.mxu0 0
  %155 = vmatpush1.bf16.msra.mxu0 %v136
  %156 = vmatprep.subr.bf16.mxu0 0
  %157 = vmatpush1.bf16.msra.mxu0 %v137
  %158 = vmatprep.subr.bf16.mxu0 0
  %159 = vmatpush1.bf16.msra.mxu0 %v138
  %160 = vmatprep.subr.bf16.mxu0 0
  %161 = vmatpush1.bf16.msra.mxu0 %v139
  %162 = vmatprep.subr.bf16.mxu0 0
  %163 = vmatpush1.bf16.msra.mxu0 %v140
  %164 = vmatprep.subr.bf16.mxu0 0
  %165 = vmatpush1.bf16.msra.mxu0 %v141
  %166 = vmatprep.subr.bf16.mxu0 0
  %167 = vmatpush1.bf16.msra.mxu0 0
  %168 = vmatprep.subr.bf16.mxu0 0
  %169 = vmatpush1.bf16.msra.mxu0 0
  %170 = vmatprep.subr.bf16.mxu0 0
  %171 = vmatpush1.bf16.msra.mxu0 0
  %172 = vmatprep.subr.bf16.mxu0 0
  %173 = vmatpush1.bf16.msra.mxu0 0
  %174 = vmatprep.subr.bf16.mxu0 0
  %175 = vmatpush1.bf16.msra.mxu0 0
  %176 = vmatprep.subr.bf16.mxu0 0
  %177 = vmatpush1.bf16.msra.mxu0 0
  %178 = vmatprep.subr.bf16.mxu0 0
  %179 = vmatpush1.bf16.msra.mxu0 0
  %180 = vmatprep.subr.bf16.mxu0 0
  %181 = vmatpush1.bf16.msra.mxu0 0
  %182 = vmatprep.mubr.bf16.mxu0 0
  %183 = vmatmul.mubr.bf16.gmra.mrb[0].mxu0 %v86
  %v184 = vpop.f32.mrb[0].mxu0
  %v185 = vadd.f32 0.0, %v184
  %v186 = vpop.f32.mrb[0].mxu0
  %v187 = vpop.f32.mrb[0].mxu0
  %v188 = vadd.f32 0.0, %v187
  %v189 = vpop.f32.mrb[0].mxu0
  %190 = vmatprep.mubr.bf16.mxu0 0
  %191 = vmatmul.mubr.bf16.gmra.mrb[0].mxu0 %v87
  %v192 = vpop.f32.mrb[0].mxu0
  %v193 = vadd.f32 0.0, %v192
  %v194 = vpop.f32.mrb[0].mxu0
  %v195 = vpop.f32.mrb[0].mxu0
  %v196 = vadd.f32 0.0, %v195
  %v197 = vpop.f32.mrb[0].mxu0
  %198 = vmatprep.mubr.bf16.mxu0 0
  %199 = vmatmul.mubr.bf16.gmra.mrb[0].mxu0 %v88
  %v200 = vpop.f32.mrb[0].mxu0
  %v201 = vadd.f32 0.0, %v200
  %v202 = vpop.f32.mrb[0].mxu0
  %v203 = vpop.f32.mrb[0].mxu0
  %v204 = vadd.f32 0.0, %v203
  %v205 = vpop.f32.mrb[0].mxu0
  %206 = vmatprep.mubr.bf16.mxu0 0
  %207 = vmatmul.mubr.bf16.gmra.mrb[0].mxu0 %v89
  %v208 = vpop.f32.mrb[0].mxu0
  %v209 = vadd.f32 0.0, %v208
  %v210 = vpop.f32.mrb[0].mxu0
  %v211 = vpop.f32.mrb[0].mxu0
  %v212 = vadd.f32 0.0, %v211
  %v213 = vpop.f32.mrb[0].mxu0
  %214 = vmatprep.mubr.bf16.mxu0 0
  %215 = vmatmul.mubr.bf16.gmra.mrb[0].mxu0 %v90
  %v216 = vpop.f32.mrb[0].mxu0
  %v217 = vadd.f32 0.0, %v216
  %v218 = vpop.f32.mrb[0].mxu0
  %v219 = vpop.f32.mrb[0].mxu0
  %v220 = vadd.f32 0.0, %v219
  %v221 = vpop.f32.mrb[0].mxu0
  %222 = vmatprep.mubr.bf16.mxu0 0
  %223 = vmatmul.mubr.bf16.gmra.mrb[0].mxu0 %v91
  %v224 = vpop.f32.mrb[0].mxu0
  %v225 = vadd.f32 0.0, %v224
  %v226 = vpop.f32.mrb[0].mxu0
  %v227 = vpop.f32.mrb[0].mxu0
  %v228 = vadd.f32 0.0, %v227
  %v229 = vpop.f32.mrb[0].mxu0
  %230 = vmatprep.mubr.bf16.mxu0 0
  %231 = vmatmul.mubr.bf16.gmra.mrb[0].mxu0 %v92
  %v232 = vpop.f32.mrb[0].mxu0
  %v233 = vadd.f32 0.0, %v232
  %v234 = vpop.f32.mrb[0].mxu0
  %v235 = vpop.f32.mrb[0].mxu0
  %v236 = vadd.f32 0.0, %v235
  %v237 = vpop.f32.mrb[0].mxu0
  %238 = vmatprep.mubr.bf16.mxu0 0
  %239 = vmatmul.mubr.bf16.gmra.mrb[0].mxu0 %v93
  %v240 = vpop.f32.mrb[0].mxu0
  %v241 = vadd.f32 0.0, %v240
  %v242 = vpop.f32.mrb[0].mxu0
  %v243 = vpop.f32.mrb[0].mxu0
  %v244 = vadd.f32 0.0, %v243
  %v245 = vpop.f32.mrb[0].mxu0
  %246 = vdwg.mxu0
  %v247 = vpack.c.bf16 %v188, %v185
  %v248 = vpack.c.bf16 %v196, %v193
  %v249 = vpack.c.bf16 %v204, %v201
  %v250 = vpack.c.bf16 %v212, %v209
  %v251 = vpack.c.bf16 %v220, %v217
  %v252 = vpack.c.bf16 %v228, %v225
  %v253 = vpack.c.bf16 %v236, %v233
  %v254 = vpack.c.bf16 %v244, %v241
  %v259 = vunpack.c.l.b16 %v50
  %v260 = vunpack.c.l.b16 %v51
  %v261 = vunpack.c.l.b16 %v52
  %v262 = vunpack.c.l.b16 %v53
  %v263 = vpack.c.b16 %v260, %v259
  %v264 = vpack.c.b16 %v262, %v261
  %vm267 = vcmask 261120
  %v269 = vsel %vm267, %v247, 0
  %v272 = vsel %vm267, %v248, 0
  %v275 = vsel %vm267, %v249, 0
  %v278 = vsel %vm267, %v250, 0
  %v281 = vsel %vm267, %v251, 0
  %v284 = vsel %vm267, %v252, 0
  %v287 = vsel %vm267, %v253, 0
  %v290 = vsel %vm267, %v254, 0
  %292 = vmatprep.subr.bf16.mxu0 0
  %293 = vmatpush1.bf16.msra.mxu0 %v263
  %294 = vmatprep.subr.bf16.mxu0 0
  %295 = vmatpush1.bf16.msra.mxu0 %v264
  %296 = vmatprep.subr.bf16.mxu0 0
  %297 = vmatpush1.bf16.msra.mxu0 0
  %298 = vmatprep.subr.bf16.mxu0 0
  %299 = vmatpush1.bf16.msra.mxu0 0
  %300 = vmatprep.subr.bf16.mxu0 0
  %301 = vmatpush1.bf16.msra.mxu0 0
  %302 = vmatprep.subr.bf16.mxu0 0
  %303 = vmatpush1.bf16.msra.mxu0 0
  %304 = vmatprep.subr.bf16.mxu0 0
  %305 = vmatpush1.bf16.msra.mxu0 0
  %306 = vmatprep.subr.bf16.mxu0 0
  %307 = vmatpush1.bf16.msra.mxu0 0
  %308 = vmatprep.subr.bf16.mxu0 0
  %309 = vmatpush1.bf16.msra.mxu0 0
  %310 = vmatprep.subr.bf16.mxu0 0
  %311 = vmatpush1.bf16.msra.mxu0 0
  %312 = vmatprep.subr.bf16.mxu0 0
  %313 = vmatpush1.bf16.msra.mxu0 0
  %314 = vmatprep.subr.bf16.mxu0 0
  %315 = vmatpush1.bf16.msra.mxu0 0
  %316 = vmatprep.subr.bf16.mxu0 0
  %317 = vmatpush1.bf16.msra.mxu0 0
  %318 = vmatprep.subr.bf16.mxu0 0
  %319 = vmatpush1.bf16.msra.mxu0 0
  %320 = vmatprep.subr.bf16.mxu0 0
  %321 = vmatpush1.bf16.msra.mxu0 0
  %322 = vmatprep.subr.bf16.mxu0 0
  %323 = vmatpush1.bf16.msra.mxu0 0
  %324 = vmatprep.mubr.bf16.mxu0 0
  %325 = vmatmul.mubr.bf16.gmra.mrb[0].mxu0 %v269
  %v326 = vpop.f32.mrb[0].mxu0
  %v327 = vadd.f32 0.0, %v326
  %v328 = vpop.f32.mrb[0].mxu0
  %v329 = vpop.f32.mrb[0].mxu0
  %v330 = vadd.f32 0.0, %v329
  %v331 = vpop.f32.mrb[0].mxu0
  %332 = vmatprep.mubr.bf16.mxu0 0
  %333 = vmatmul.mubr.bf16.gmra.mrb[0].mxu0 %v272
  %v334 = vpop.f32.mrb[0].mxu0
  %v335 = vadd.f32 0.0, %v334
  %v336 = vpop.f32.mrb[0].mxu0
  %v337 = vpop.f32.mrb[0].mxu0
  %v338 = vadd.f32 0.0, %v337
  %v339 = vpop.f32.mrb[0].mxu0
  %340 = vmatprep.mubr.bf16.mxu0 0
  %341 = vmatmul.mubr.bf16.gmra.mrb[0].mxu0 %v275
  %v342 = vpop.f32.mrb[0].mxu0
  %v343 = vadd.f32 0.0, %v342
  %v344 = vpop.f32.mrb[0].mxu0
  %v345 = vpop.f32.mrb[0].mxu0
  %v346 = vadd.f32 0.0, %v345
  %v347 = vpop.f32.mrb[0].mxu0
  %348 = vmatprep.mubr.bf16.mxu0 0
  %349 = vmatmul.mubr.bf16.gmra.mrb[0].mxu0 %v278
  %v350 = vpop.f32.mrb[0].mxu0
  %v351 = vadd.f32 0.0, %v350
  %v352 = vpop.f32.mrb[0].mxu0
  %v353 = vpop.f32.mrb[0].mxu0
  %v354 = vadd.f32 0.0, %v353
  %v355 = vpop.f32.mrb[0].mxu0
  %356 = vmatprep.mubr.bf16.mxu0 0
  %357 = vmatmul.mubr.bf16.gmra.mrb[0].mxu0 %v281
  %v358 = vpop.f32.mrb[0].mxu0
  %v359 = vadd.f32 0.0, %v358
  %v360 = vpop.f32.mrb[0].mxu0
  %v361 = vpop.f32.mrb[0].mxu0
  %v362 = vadd.f32 0.0, %v361
  %v363 = vpop.f32.mrb[0].mxu0
  %364 = vmatprep.mubr.bf16.mxu0 0
  %365 = vmatmul.mubr.bf16.gmra.mrb[0].mxu0 %v284
  %v366 = vpop.f32.mrb[0].mxu0
  %v367 = vadd.f32 0.0, %v366
  %v368 = vpop.f32.mrb[0].mxu0
  %v369 = vpop.f32.mrb[0].mxu0
  %v370 = vadd.f32 0.0, %v369
  %v371 = vpop.f32.mrb[0].mxu0
  %372 = vmatprep.mubr.bf16.mxu0 0
  %373 = vmatmul.mubr.bf16.gmra.mrb[0].mxu0 %v287
  %v374 = vpop.f32.mrb[0].mxu0
  %v375 = vadd.f32 0.0, %v374
  %v376 = vpop.f32.mrb[0].mxu0
  %v377 = vpop.f32.mrb[0].mxu0
  %v378 = vadd.f32 0.0, %v377
  %v379 = vpop.f32.mrb[0].mxu0
  %380 = vmatprep.mubr.bf16.mxu0 0
  %381 = vmatmul.mubr.bf16.gmra.mrb[0].mxu0 %v290
  %v382 = vpop.f32.mrb[0].mxu0
  %v383 = vadd.f32 0.0, %v382
  %v384 = vpop.f32.mrb[0].mxu0
  %v385 = vpop.f32.mrb[0].mxu0
  %v386 = vadd.f32 0.0, %v385
  %v387 = vpop.f32.mrb[0].mxu0
  %388 = vdwg.mxu0
  %v389 = vmul.f32 %v327, %v327
  %v390 = vmul.f32 %v330, %v330
  %v391 = vmul.f32 %v335, %v335
  %v392 = vmul.f32 %v338, %v338
  %v393 = vmul.f32 %v343, %v343
  %v394 = vmul.f32 %v346, %v346
  %v395 = vmul.f32 %v351, %v351
  %v396 = vmul.f32 %v354, %v354
  %v397 = vmul.f32 %v359, %v359
  %v398 = vmul.f32 %v362, %v362
  %v399 = vmul.f32 %v367, %v367
  %v400 = vmul.f32 %v370, %v370
  %v401 = vmul.f32 %v375, %v375
  %v402 = vmul.f32 %v378, %v378
  %v403 = vmul.f32 %v383, %v383
  %v404 = vmul.f32 %v386, %v386
  %vm405 = vcmask 523264
  %v406 = vsel %vm405, %v389, 0.0
  %407 = vadd.xlane.f32.xlu0 %v406
  %v408 = vpop.xlane.xlu0 %407
  %v409 = vsel %vm405, %v390, 0.0
  %410 = vadd.xlane.f32.xlu0 %v409
  %v411 = vpop.xlane.xlu0 %410
  %v412 = vsel %vm405, %v391, 0.0
  %413 = vadd.xlane.f32.xlu0 %v412
  %v414 = vpop.xlane.xlu0 %413
  %v415 = vsel %vm405, %v392, 0.0
  %416 = vadd.xlane.f32.xlu0 %v415
  %v417 = vpop.xlane.xlu0 %416
  %v418 = vsel %vm405, %v393, 0.0
  %419 = vadd.xlane.f32.xlu0 %v418
  %v420 = vpop.xlane.xlu0 %419
  %v421 = vsel %vm405, %v394, 0.0
  %422 = vadd.xlane.f32.xlu0 %v421
  %v423 = vpop.xlane.xlu0 %422
  %v424 = vsel %vm405, %v395, 0.0
  %425 = vadd.xlane.f32.xlu0 %v424
  %v426 = vpop.xlane.xlu0 %425
  %v427 = vsel %vm405, %v396, 0.0
  %428 = vadd.xlane.f32.xlu0 %v427
  %v429 = vpop.xlane.xlu0 %428
  %v430 = vsel %vm405, %v397, 0.0
  %431 = vadd.xlane.f32.xlu0 %v430
  %v432 = vpop.xlane.xlu0 %431
  %v433 = vsel %vm405, %v398, 0.0
  %434 = vadd.xlane.f32.xlu0 %v433
  %v435 = vpop.xlane.xlu0 %434
  %v436 = vsel %vm405, %v399, 0.0
  %437 = vadd.xlane.f32.xlu0 %v436
  %v438 = vpop.xlane.xlu0 %437
  %v439 = vsel %vm405, %v400, 0.0
  %440 = vadd.xlane.f32.xlu0 %v439
  %v441 = vpop.xlane.xlu0 %440
  %v442 = vsel %vm405, %v401, 0.0
  %443 = vadd.xlane.f32.xlu0 %v442
  %v444 = vpop.xlane.xlu0 %443
  %v445 = vsel %vm405, %v402, 0.0
  %446 = vadd.xlane.f32.xlu0 %v445
  %v447 = vpop.xlane.xlu0 %446
  %v448 = vsel %vm405, %v403, 0.0
  %449 = vadd.xlane.f32.xlu0 %v448
  %v450 = vpop.xlane.xlu0 %449
  %v451 = vsel %vm405, %v404, 0.0
  %452 = vadd.xlane.f32.xlu0 %v451
  %v453 = vpop.xlane.xlu0 %452
  %v454 = vmax.f32 %v408, 1e-24
  %v455 = vmax.f32 %v411, 1e-24
  %v456 = vmax.f32 %v414, 1e-24
  %v457 = vmax.f32 %v417, 1e-24
  %v458 = vmax.f32 %v420, 1e-24
  %v459 = vmax.f32 %v423, 1e-24
  %v460 = vmax.f32 %v426, 1e-24
  %v461 = vmax.f32 %v429, 1e-24
  %v462 = vmax.f32 %v432, 1e-24
  %v463 = vmax.f32 %v435, 1e-24
  %v464 = vmax.f32 %v438, 1e-24
  %v465 = vmax.f32 %v441, 1e-24
  %v466 = vmax.f32 %v444, 1e-24
  %v467 = vmax.f32 %v447, 1e-24
  %v468 = vmax.f32 %v450, 1e-24
  %v469 = vmax.f32 %v453, 1e-24
  %v470 = vrsqrt.pop %v454
  %v471 = vrsqrt.pop %v455
  %v472 = vrsqrt.pop %v456
  %v473 = vrsqrt.pop %v457
  %v474 = vrsqrt.pop %v458
  %v475 = vrsqrt.pop %v459
  %v476 = vrsqrt.pop %v460
  %v477 = vrsqrt.pop %v461
  %v478 = vrsqrt.pop %v462
  %v479 = vrsqrt.pop %v463
  %v480 = vrsqrt.pop %v464
  %v481 = vrsqrt.pop %v465
  %v482 = vrsqrt.pop %v466
  %v483 = vrsqrt.pop %v467
  %v484 = vrsqrt.pop %v468
  %v485 = vrsqrt.pop %v469
  %v486 = vmul.f32 %v327, %v470
  %v487 = vmul.f32 %v330, %v471
  %v488 = vmul.f32 %v335, %v472
  %v489 = vmul.f32 %v338, %v473
  %v490 = vmul.f32 %v343, %v474
  %v491 = vmul.f32 %v346, %v475
  %v492 = vmul.f32 %v351, %v476
  %v493 = vmul.f32 %v354, %v477
  %v494 = vmul.f32 %v359, %v478
  %v495 = vmul.f32 %v362, %v479
  %v496 = vmul.f32 %v367, %v480
  %v497 = vmul.f32 %v370, %v481
  %v498 = vmul.f32 %v375, %v482
  %v499 = vmul.f32 %v378, %v483
  %v500 = vmul.f32 %v383, %v484
  %v501 = vmul.f32 %v386, %v485
  %v502 = vmax.f32 %v486, 0.0
  %v503 = vmax.f32 %v487, 0.0
  %v504 = vmax.f32 %v488, 0.0
  %v505 = vmax.f32 %v489, 0.0
  %v506 = vmax.f32 %v490, 0.0
  %v507 = vmax.f32 %v491, 0.0
  %v508 = vmax.f32 %v492, 0.0
  %v509 = vmax.f32 %v493, 0.0
  %v510 = vmax.f32 %v494, 0.0
  %v511 = vmax.f32 %v495, 0.0
  %v512 = vmax.f32 %v496, 0.0
  %v513 = vmax.f32 %v497, 0.0
  %v514 = vmax.f32 %v498, 0.0
  %v515 = vmax.f32 %v499, 0.0
  %v516 = vmax.f32 %v500, 0.0
  %v517 = vmax.f32 %v501, 0.0
  %v518 = vpack.c.bf16 %v503, %v502
  %v519 = vpack.c.bf16 %v505, %v504
  %v520 = vpack.c.bf16 %v507, %v506
  %v521 = vpack.c.bf16 %v509, %v508
  %v522 = vpack.c.bf16 %v511, %v510
  %v523 = vpack.c.bf16 %v513, %v512
  %v524 = vpack.c.bf16 %v515, %v514
  %v525 = vpack.c.bf16 %v517, %v516
  %v526 = vld [vmem:[%s3] sm:$0xf]
  %v527 = vld [vmem:[%s3 + $0x4] sm:$0xf]
  %v528 = vld [vmem:[%s3 + $0x8] sm:$0xf]
  %v529 = vld [vmem:[%s3 + $0xc] sm:$0xf]
  %v530 = vld [vmem:[%s3 + $0x10] sm:$0xf]
  %v531 = vld [vmem:[%s3 + $0x14] sm:$0xf]
  %v532 = vld [vmem:[%s3 + $0x18] sm:$0xf]
  %v533 = vld [vmem:[%s3 + $0x1c] sm:$0xf]
  %v542 = vunpack.c.l.b16 %v526
  %v543 = vunpack.c.l.b16 %v527
  %v544 = vunpack.c.l.b16 %v528
  %v545 = vunpack.c.l.b16 %v529
  %v546 = vunpack.c.l.b16 %v530
  %v547 = vunpack.c.l.b16 %v531
  %v548 = vunpack.c.l.b16 %v532
  %v549 = vunpack.c.l.b16 %v533
  %v550 = vpack.c.b16 %v543, %v542
  %v551 = vpack.c.b16 %v545, %v544
  %v552 = vpack.c.b16 %v547, %v546
  %v553 = vpack.c.b16 %v549, %v548
  %v559 = vsel %vm405, %v518, 0
  %v562 = vsel %vm405, %v519, 0
  %v565 = vsel %vm405, %v520, 0
  %v568 = vsel %vm405, %v521, 0
  %v571 = vsel %vm405, %v522, 0
  %v574 = vsel %vm405, %v523, 0
  %v577 = vsel %vm405, %v524, 0
  %v580 = vsel %vm405, %v525, 0
  %582 = vmatprep.subr.bf16.mxu0 0
  %583 = vmatpush1.bf16.msra.mxu0 %v550
  %584 = vmatprep.subr.bf16.mxu0 0
  %585 = vmatpush1.bf16.msra.mxu0 %v551
  %586 = vmatprep.subr.bf16.mxu0 0
  %587 = vmatpush1.bf16.msra.mxu0 %v552
  %588 = vmatprep.subr.bf16.mxu0 0
  %589 = vmatpush1.bf16.msra.mxu0 %v553
  %590 = vmatprep.subr.bf16.mxu0 0
  %591 = vmatpush1.bf16.msra.mxu0 0
  %592 = vmatprep.subr.bf16.mxu0 0
  %593 = vmatpush1.bf16.msra.mxu0 0
  %594 = vmatprep.subr.bf16.mxu0 0
  %595 = vmatpush1.bf16.msra.mxu0 0
  %596 = vmatprep.subr.bf16.mxu0 0
  %597 = vmatpush1.bf16.msra.mxu0 0
  %598 = vmatprep.subr.bf16.mxu0 0
  %599 = vmatpush1.bf16.msra.mxu0 0
  %600 = vmatprep.subr.bf16.mxu0 0
  %601 = vmatpush1.bf16.msra.mxu0 0
  %602 = vmatprep.subr.bf16.mxu0 0
  %603 = vmatpush1.bf16.msra.mxu0 0
  %604 = vmatprep.subr.bf16.mxu0 0
  %605 = vmatpush1.bf16.msra.mxu0 0
  %606 = vmatprep.subr.bf16.mxu0 0
  %607 = vmatpush1.bf16.msra.mxu0 0
  %608 = vmatprep.subr.bf16.mxu0 0
  %609 = vmatpush1.bf16.msra.mxu0 0
  %610 = vmatprep.subr.bf16.mxu0 0
  %611 = vmatpush1.bf16.msra.mxu0 0
  %612 = vmatprep.subr.bf16.mxu0 0
  %613 = vmatpush1.bf16.msra.mxu0 0
  %614 = vmatprep.mubr.bf16.mxu0 0
  %615 = vmatmul.mubr.bf16.gmra.mrb[0].mxu0 %v559
  %v616 = vpop.f32.mrb[0].mxu0
  %v617 = vadd.f32 0.0, %v616
  %v618 = vpop.f32.mrb[0].mxu0
  %v619 = vpop.f32.mrb[0].mxu0
  %v620 = vadd.f32 0.0, %v619
  %v621 = vpop.f32.mrb[0].mxu0
  %622 = vmatprep.mubr.bf16.mxu0 0
  %623 = vmatmul.mubr.bf16.gmra.mrb[0].mxu0 %v562
  %v624 = vpop.f32.mrb[0].mxu0
  %v625 = vadd.f32 0.0, %v624
  %v626 = vpop.f32.mrb[0].mxu0
  %v627 = vpop.f32.mrb[0].mxu0
  %v628 = vadd.f32 0.0, %v627
  %v629 = vpop.f32.mrb[0].mxu0
  %630 = vmatprep.mubr.bf16.mxu0 0
  %631 = vmatmul.mubr.bf16.gmra.mrb[0].mxu0 %v565
  %v632 = vpop.f32.mrb[0].mxu0
  %v633 = vadd.f32 0.0, %v632
  %v634 = vpop.f32.mrb[0].mxu0
  %v635 = vpop.f32.mrb[0].mxu0
  %v636 = vadd.f32 0.0, %v635
  %v637 = vpop.f32.mrb[0].mxu0
  %638 = vmatprep.mubr.bf16.mxu0 0
  %639 = vmatmul.mubr.bf16.gmra.mrb[0].mxu0 %v568
  %v640 = vpop.f32.mrb[0].mxu0
  %v641 = vadd.f32 0.0, %v640
  %v642 = vpop.f32.mrb[0].mxu0
  %v643 = vpop.f32.mrb[0].mxu0
  %v644 = vadd.f32 0.0, %v643
  %v645 = vpop.f32.mrb[0].mxu0
  %646 = vmatprep.mubr.bf16.mxu0 0
  %647 = vmatmul.mubr.bf16.gmra.mrb[0].mxu0 %v571
  %v648 = vpop.f32.mrb[0].mxu0
  %v649 = vadd.f32 0.0, %v648
  %v650 = vpop.f32.mrb[0].mxu0
  %v651 = vpop.f32.mrb[0].mxu0
  %v652 = vadd.f32 0.0, %v651
  %v653 = vpop.f32.mrb[0].mxu0
  %654 = vmatprep.mubr.bf16.mxu0 0
  %655 = vmatmul.mubr.bf16.gmra.mrb[0].mxu0 %v574
  %v656 = vpop.f32.mrb[0].mxu0
  %v657 = vadd.f32 0.0, %v656
  %v658 = vpop.f32.mrb[0].mxu0
  %v659 = vpop.f32.mrb[0].mxu0
  %v660 = vadd.f32 0.0, %v659
  %v661 = vpop.f32.mrb[0].mxu0
  %662 = vmatprep.mubr.bf16.mxu0 0
  %663 = vmatmul.mubr.bf16.gmra.mrb[0].mxu0 %v577
  %v664 = vpop.f32.mrb[0].mxu0
  %v665 = vadd.f32 0.0, %v664
  %v666 = vpop.f32.mrb[0].mxu0
  %v667 = vpop.f32.mrb[0].mxu0
  %v668 = vadd.f32 0.0, %v667
  %v669 = vpop.f32.mrb[0].mxu0
  %670 = vmatprep.mubr.bf16.mxu0 0
  %671 = vmatmul.mubr.bf16.gmra.mrb[0].mxu0 %v580
  %v672 = vpop.f32.mrb[0].mxu0
  %v673 = vadd.f32 0.0, %v672
  %v674 = vpop.f32.mrb[0].mxu0
  %v675 = vpop.f32.mrb[0].mxu0
  %v676 = vadd.f32 0.0, %v675
  %v677 = vpop.f32.mrb[0].mxu0
  %678 = vdwg.mxu0
  %v679 = vpack.c.bf16 %v620, %v617
  %v680 = vpack.c.bf16 %v628, %v625
  %v681 = vpack.c.bf16 %v636, %v633
  %v682 = vpack.c.bf16 %v644, %v641
  %v683 = vpack.c.bf16 %v652, %v649
  %v684 = vpack.c.bf16 %v660, %v657
  %v685 = vpack.c.bf16 %v668, %v665
  %v686 = vpack.c.bf16 %v676, %v673
  %687 = vmatprep.subr.bf16.mxu0 0
  %688 = vmatpush1.bf16.msra.mxu0 %v679
  %689 = vmatprep.subr.bf16.mxu0 0
  %690 = vmatpush1.bf16.msra.mxu0 %v680
  %691 = vmatprep.subr.bf16.mxu0 0
  %692 = vmatpush1.bf16.msra.mxu0 %v681
  %693 = vmatprep.subr.bf16.mxu0 0
  %694 = vmatpush1.bf16.msra.mxu0 %v682
  %695 = vmatprep.subr.bf16.mxu0 0
  %696 = vmatpush1.bf16.msra.mxu0 %v683
  %697 = vmatprep.subr.bf16.mxu0 0
  %698 = vmatpush1.bf16.msra.mxu0 %v684
  %699 = vmatprep.subr.bf16.mxu0 0
  %700 = vmatpush1.bf16.msra.mxu0 %v685
  %701 = vmatprep.subr.bf16.mxu0 0
  %702 = vmatpush1.bf16.msra.mxu0 %v686
  %703 = vmatprep.subr.bf16.mxu0 0
  %704 = vmatpush1.bf16.msra.mxu0 0
  %705 = vmatprep.subr.bf16.mxu0 0
  %706 = vmatpush1.bf16.msra.mxu0 0
  %707 = vmatprep.subr.bf16.mxu0 0
  %708 = vmatpush1.bf16.msra.mxu0 0
  %709 = vmatprep.subr.bf16.mxu0 0
  %710 = vmatpush1.bf16.msra.mxu0 0
  %711 = vmatprep.subr.bf16.mxu0 0
  %712 = vmatpush1.bf16.msra.mxu0 0
  %713 = vmatprep.subr.bf16.mxu0 0
  %714 = vmatpush1.bf16.msra.mxu0 0
  %715 = vmatprep.subr.bf16.mxu0 0
  %716 = vmatpush1.bf16.msra.mxu0 0
  %717 = vmatprep.subr.bf16.mxu0 0
  %718 = vmatpush1.bf16.msra.mxu0 0
  %719 = vmatprep.mubr.bf16.mxu0 0
  %720 = vmatmul.mubr.bf16.gmra.mrb[0].mxu0 %v86
  %v721 = vpop.f32.mrb[0].mxu0
  %v722 = vadd.f32 0.0, %v721
  %v723 = vpop.f32.mrb[0].mxu0
  %v724 = vpop.f32.mrb[0].mxu0
  %v725 = vadd.f32 0.0, %v724
  %v726 = vpop.f32.mrb[0].mxu0
  %727 = vmatprep.mubr.bf16.mxu0 0
  %728 = vmatmul.mubr.bf16.gmra.mrb[0].mxu0 %v87
  %v729 = vpop.f32.mrb[0].mxu0
  %v730 = vadd.f32 0.0, %v729
  %v731 = vpop.f32.mrb[0].mxu0
  %v732 = vpop.f32.mrb[0].mxu0
  %v733 = vadd.f32 0.0, %v732
  %v734 = vpop.f32.mrb[0].mxu0
  %735 = vmatprep.mubr.bf16.mxu0 0
  %736 = vmatmul.mubr.bf16.gmra.mrb[0].mxu0 %v88
  %v737 = vpop.f32.mrb[0].mxu0
  %v738 = vadd.f32 0.0, %v737
  %v739 = vpop.f32.mrb[0].mxu0
  %v740 = vpop.f32.mrb[0].mxu0
  %v741 = vadd.f32 0.0, %v740
  %v742 = vpop.f32.mrb[0].mxu0
  %743 = vmatprep.mubr.bf16.mxu0 0
  %744 = vmatmul.mubr.bf16.gmra.mrb[0].mxu0 %v89
  %v745 = vpop.f32.mrb[0].mxu0
  %v746 = vadd.f32 0.0, %v745
  %v747 = vpop.f32.mrb[0].mxu0
  %v748 = vpop.f32.mrb[0].mxu0
  %v749 = vadd.f32 0.0, %v748
  %v750 = vpop.f32.mrb[0].mxu0
  %751 = vmatprep.mubr.bf16.mxu0 0
  %752 = vmatmul.mubr.bf16.gmra.mrb[0].mxu0 %v90
  %v753 = vpop.f32.mrb[0].mxu0
  %v754 = vadd.f32 0.0, %v753
  %v755 = vpop.f32.mrb[0].mxu0
  %v756 = vpop.f32.mrb[0].mxu0
  %v757 = vadd.f32 0.0, %v756
  %v758 = vpop.f32.mrb[0].mxu0
  %759 = vmatprep.mubr.bf16.mxu0 0
  %760 = vmatmul.mubr.bf16.gmra.mrb[0].mxu0 %v91
  %v761 = vpop.f32.mrb[0].mxu0
  %v762 = vadd.f32 0.0, %v761
  %v763 = vpop.f32.mrb[0].mxu0
  %v764 = vpop.f32.mrb[0].mxu0
  %v765 = vadd.f32 0.0, %v764
  %v766 = vpop.f32.mrb[0].mxu0
  %767 = vmatprep.mubr.bf16.mxu0 0
  %768 = vmatmul.mubr.bf16.gmra.mrb[0].mxu0 %v92
  %v769 = vpop.f32.mrb[0].mxu0
  %v770 = vadd.f32 0.0, %v769
  %v771 = vpop.f32.mrb[0].mxu0
  %v772 = vpop.f32.mrb[0].mxu0
  %v773 = vadd.f32 0.0, %v772
  %v774 = vpop.f32.mrb[0].mxu0
  %775 = vmatprep.mubr.bf16.mxu0 0
  %776 = vmatmul.mubr.bf16.gmra.mrb[0].mxu0 %v93
  %v777 = vpop.f32.mrb[0].mxu0
  %v778 = vadd.f32 0.0, %v777
  %v779 = vpop.f32.mrb[0].mxu0
  %v780 = vpop.f32.mrb[0].mxu0
  %v781 = vadd.f32 0.0, %v780
  %v782 = vpop.f32.mrb[0].mxu0
  %783 = vdwg.mxu0
  %vm784 = vcmask 130048
  %785 = vst.msk [vmem:[%s4] sm:$0xff] %vm784, %v722
  %786 = vst.msk [vmem:[%s4 + $0x8] sm:$0xff] %vm784, %v725
  %787 = vst.msk [vmem:[%s4 + $0x10] sm:$0xff] %vm784, %v730
  %788 = vst.msk [vmem:[%s4 + $0x18] sm:$0xff] %vm784, %v733
  %789 = vst.msk [vmem:[%s4 + $0x20] sm:$0xff] %vm784, %v738
  %790 = vst.msk [vmem:[%s4 + $0x28] sm:$0xff] %vm784, %v741
  %791 = vst.msk [vmem:[%s4 + $0x30] sm:$0xff] %vm784, %v746
  %792 = vst.msk [vmem:[%s4 + $0x38] sm:$0xff] %vm784, %v749
  %793 = vst.msk [vmem:[%s4 + $0x40] sm:$0xff] %vm784, %v754
  %794 = vst.msk [vmem:[%s4 + $0x48] sm:$0xff] %vm784, %v757
  %795 = vst.msk [vmem:[%s4 + $0x50] sm:$0xff] %vm784, %v762
  %796 = vst.msk [vmem:[%s4 + $0x58] sm:$0xff] %vm784, %v765
  %797 = vst.msk [vmem:[%s4 + $0x60] sm:$0xff] %vm784, %v770
  %798 = vst.msk [vmem:[%s4 + $0x68] sm:$0xff] %vm784, %v773
  %799 = vst.msk [vmem:[%s4 + $0x70] sm:$0xff] %vm784, %v778
  %800 = vst.msk [vmem:[%s4 + $0x78] sm:$0xff] %vm784, %v781
  // Predicated region
  $region18: #{tpu_custom_call.1} parent=0 // pred_check
    _
  $region19: #{tpu_custom_call.1} parent=0 // pred_check_branch
    %802 = sbr.rel (0) target = $region21
  $region20: #{tpu_custom_call.1} parent=0 // pred_region
    _
  $region21: #{tpu_custom_call.1} parent=0 // pred_fallthru
    _
  // Predicated region
  $region22: #{tpu_custom_call.1} parent=0 // pred_check
    _
  $region23: #{tpu_custom_call.1} parent=0 // pred_check_branch
    %804 = sbr.rel (0) target = $region25
  $region24: #{tpu_custom_call.1} parent=0 // pred_region
    _
  $region25: #{tpu_custom_call.1} parent=0 // pred_fallthru
    _

</llo_original>
